<compile_context>
chip_gen: v7x
topology: tpu7x:2x2x1
jax: 0.10.0
libtpu: 0.0.40
codegen_flags: <defaults>
</compile_context>

<pallas_src>
import functools

import jax
import jax.numpy as jnp
from jax.experimental import pallas as pl
from jax.experimental.pallas import tpu as pltpu


# --------------------------------------------------------------------------- #
# Kernels
# --------------------------------------------------------------------------- #
def _quadruplet_kernel(x_ref, neg_ref, pos_ref, ext_ref, out_ref,
                       *, margin1, margin2):
    """Single feature block per batch tile (block minor dim == full D)."""
    x = x_ref[...].astype(jnp.float32)
    neg = neg_ref[...].astype(jnp.float32)
    pos = pos_ref[...].astype(jnp.float32)
    ext = ext_ref[...].astype(jnp.float32)

    dxp = x - pos      # (TB, D)
    dxn = x - neg
    dne = neg - ext

    # Two lane reductions instead of three:
    #   d1 - d2 = sum((x-pos)^2 - (x-neg)^2)
    #   d1 - d3 = sum((x-pos)^2 - (neg-extra)^2)
    sq_xp = dxp * dxp
    d1_minus_d2 = jnp.sum(sq_xp - dxn * dxn, axis=1, keepdims=True)  # (TB, 1)
    d1_minus_d3 = jnp.sum(sq_xp - dne * dne, axis=1, keepdims=True)  # (TB, 1)

    out_ref[...] = (jnp.maximum(margin1 + d1_minus_d2, 0.0) +
                    jnp.maximum(margin2 + d1_minus_d3, 0.0))         # (TB, 1)


def _quadruplet_kernel_dtiled(x_ref, neg_ref, pos_ref, ext_ref, out_ref,
                              acc12_ref, acc13_ref,
                              *, margin1, margin2, d_total, tile_d, mask_d):
    """Feature-tiled variant: accumulate per-row partial sums across the D axis."""
    dj = pl.program_id(1)

    @pl.when(dj == 0)
    def _():
        acc12_ref[...] = jnp.zeros_like(acc12_ref)
        acc13_ref[...] = jnp.zeros_like(acc13_ref)

    x = x_ref[...].astype(jnp.float32)
    neg = neg_ref[...].astype(jnp.float32)
    pos = pos_ref[...].astype(jnp.float32)
    ext = ext_ref[...].astype(jnp.float32)

    dxp = x - pos
    dxn = x - neg
    dne = neg - ext

    if mask_d:
        # Ragged last D block: zero out columns >= D so garbage reads never
        # pollute the row sums.
        col = jax.lax.broadcasted_iota(jnp.int32, x.shape, 1) + dj * tile_d
        valid = col < d_total
        dxp = jnp.where(valid, dxp, 0.0)
        dxn = jnp.where(valid, dxn, 0.0)
        dne = jnp.where(valid, dne, 0.0)

    sq_xp = dxp * dxp
    acc12_ref[...] += jnp.sum(sq_xp - dxn * dxn, axis=1, keepdims=True)
    acc13_ref[...] += jnp.sum(sq_xp - dne * dne, axis=1, keepdims=True)

    @pl.when(dj == pl.num_programs(1) - 1)
    def _():
        out_ref[...] = (jnp.maximum(margin1 + acc12_ref[...], 0.0) +
                        jnp.maximum(margin2 + acc13_ref[...], 0.0))


# --------------------------------------------------------------------------- #
# Wrapper
# --------------------------------------------------------------------------- #
def _cdiv(a, b):
    return (a + b - 1) // b


def _round_up(v, m):
    return (v + m - 1) // m * m


def quadruplet_loss(x, negative, positive, extra,
                    margin1=2.0, margin2=1.0,
                    vmem_budget_bytes=None, min_grid_steps=2):
    """Pallas TPU quadruplet loss. Inputs are (B, D); returns a scalar f32."""
    B, D = x.shape
    itemsize = jnp.dtype(x.dtype).itemsize
    # Sublane packing of the storage dtype: 8 for f32, 16 for bf16, 32 for int8/fp8.
    sublane = max(8, 32 // itemsize)

    # Generation-aware VMEM sizing (64 MiB/TC on v7x, 128 MiB on v5e/v6e).
    try:
        vmem_cap = int(pltpu.get_tpu_info().vmem_capacity_bytes)
    except Exception:
        vmem_cap = 64 << 20
    if vmem_budget_bytes is None:
        vmem_budget_bytes = vmem_cap // 2          # tile-selection budget
    vmem_limit_cap = (vmem_cap * 3) // 4           # ~48 MiB v7x, ~96 MiB v5e/v6e

    # Target >= min_grid_steps batch tiles (megacore sharding on v7x).
    b_ceil = _round_up(B, sublane)
    want_steps = max(1, min(min_grid_steps, b_ceil // sublane))
    tile_b_target = _round_up(_cdiv(B, want_steps), sublane)

    per_row_full = 4 * 2 * D * itemsize            # 4 inputs x 2 pipeline buffers
    if per_row_full * sublane <= vmem_budget_bytes:
        # ---- single feature block: minor block dim == full D (no pad copies) ----
        tile_d = D
        cap_rows = max(sublane,
                       (vmem_budget_bytes // per_row_full) // sublane * sublane)
        tile_b = int(min(tile_b_target, cap_rows, b_ceil))
        grid = (_cdiv(B, tile_b),)
        in_spec = pl.BlockSpec((tile_b, D), lambda i: (i, 0))
        out_spec = pl.BlockSpec((tile_b, 1), lambda i: (i, 0))
        kernel = functools.partial(_quadruplet_kernel,
                                   margin1=float(margin1), margin2=float(margin2))
        scratch = []
        dim_sem = ("parallel",)
    else:
        # ---- large-D robustness path: tile the feature axis and accumulate ----
        tile_d = (vmem_budget_bytes // (4 * 2 * 256 * itemsize)) // 128 * 128
        tile_d = int(min(max(128, tile_d), _round_up(D, 128)))
        per_row = 4 * 2 * tile_d * itemsize
        cap_rows = max(sublane,
                       (vmem_budget_bytes // per_row) // sublane * sublane)
        tile_b = int(min(tile_b_target, cap_rows, b_ceil))
        grid = (_cdiv(B, tile_b), _cdiv(D, tile_d))
        in_spec = pl.BlockSpec((tile_b, tile_d), lambda i, j: (i, j))
        out_spec = pl.BlockSpec((tile_b, 1), lambda i, j: (i, 0))
        kernel = functools.partial(
            _quadruplet_kernel_dtiled,
            margin1=float(margin1), margin2=float(margin2),
            d_total=D, tile_d=tile_d, mask_d=(D % tile_d != 0))
        scratch = [pltpu.VMEM((tile_b, 1), jnp.float32),
                   pltpu.VMEM((tile_b, 1), jnp.float32)]
        dim_sem = ("parallel", "arbitrary")

    # VMEM actually used: 4 streamed input tiles double-buffered + tiny out/scratch.
    working_set = 4 * 2 * tile_b * tile_d * itemsize + 6 * tile_b * 4
    vmem_limit = int(max(16 << 20, min(working_set + (8 << 20), vmem_limit_cap)))

    cost = pl.CostEstimate(
        flops=10 * B * D,
        transcendentals=0,
        bytes_accessed=4 * B * D * itemsize + B * 4,
    )

    per_row_hinge = pl.pallas_call(
        kernel,
        out_shape=jax.ShapeDtypeStruct((B, 1), jnp.float32),
        grid_spec=pltpu.PrefetchScalarGridSpec(
            num_scalar_prefetch=0,
            grid=grid,
            in_specs=[in_spec, in_spec, in_spec, in_spec],
            out_specs=out_spec,
            scratch_shapes=scratch,
        ),
        compiler_params=pltpu.CompilerParams(
            dimension_semantics=dim_sem,
            vmem_limit_bytes=vmem_limit,
        ),
        cost_estimate=cost,
    )(x, negative, positive, extra)

    # Tiny final reduction (mean over exactly B rows) in plain JAX.
    return jnp.sum(per_row_hinge[:, 0]) / B


def quadruplet_loss_ref(x, negative, positive, extra, margin1=2.0, margin2=1.0):
    x = x.astype(jnp.float32)
    negative = negative.astype(jnp.float32)
    positive = positive.astype(jnp.float32)
    extra = extra.astype(jnp.float32)
    d1 = jnp.sum((x - positive) ** 2, axis=1)
    d2 = jnp.sum((x - negative) ** 2, axis=1)
    d3 = jnp.sum((negative - extra) ** 2, axis=1)
    return jnp.mean(jnp.maximum(margin1 + d1 - d2, 0.0) +
                    jnp.maximum(margin2 + d1 - d3, 0.0))


if __name__ == "__main__":
    key = jax.random.PRNGKey(0)

    # 1) Small unaligned shapes: batch=48, D=100 (full-D block, no padding copies,
    #    two batch grid steps -> v7x megacore sharding).
    B, D = 48, 100
    kx, kn, kp, ke = jax.random.split(key, 4)
    x = jax.random.normal(kx, (B, D), dtype=jnp.float32)
    negative = jax.random.normal(kn, (B, D), dtype=jnp.float32)
    positive = jax.random.normal(kp, (B, D), dtype=jnp.float32)
    extra = jax.random.normal(ke, (B, D), dtype=jnp.float32)

    ref = quadruplet_loss_ref(x, negative, positive, extra)
    loss = jax.block_until_ready(quadruplet_loss(x, negative, positive, extra))
    assert jnp.allclose(loss, ref, rtol=1e-4, atol=1e-4), (loss, ref)

    # 2) bf16 storage inputs (half HBM traffic), 16-row sublane-aligned tiles and
    #    a ragged trailing batch block (rows >= B masked at writeback).
    xb, nb, pb, eb = (a.astype(jnp.bfloat16) for a in (x, negative, positive, extra))
    ref_bf16 = quadruplet_loss_ref(xb, nb, pb, eb)
    loss_bf16 = jax.block_until_ready(quadruplet_loss(xb, nb, pb, eb))
    assert jnp.allclose(loss_bf16, ref_bf16, rtol=1e-3, atol=1e-3), (loss_bf16, ref_bf16)

    # 3) Feature-tiled robustness path: D=300 with a tiny VMEM budget forces
    #    tile_d=128 (3 D-steps, ragged last block masked in-kernel) and tile_b=8.
    D2 = 300
    kx2, kn2, kp2, ke2 = jax.random.split(jax.random.PRNGKey(1), 4)
    x2 = jax.random.normal(kx2, (B, D2), dtype=jnp.float32)
    n2 = jax.random.normal(kn2, (B, D2), dtype=jnp.float32)
    p2 = jax.random.normal(kp2, (B, D2), dtype=jnp.float32)
    e2 = jax.random.normal(ke2, (B, D2), dtype=jnp.float32)
    ref2 = quadruplet_loss_ref(x2, n2, p2, e2)
    loss2 = jax.block_until_ready(
        quadruplet_loss(x2, n2, p2, e2, vmem_budget_bytes=32 * 1024))
    assert jnp.allclose(loss2, ref2, rtol=1e-4, atol=1e-4), (loss2, ref2)

    print("KERNEL_OK")
</pallas_src>

<mosaic_0001>
module attributes {stable_mosaic.version = 11 : i64} {
  func.func @_quadruplet_kernel(%arg0: i32, %arg1: memref<24x100xf32, #tpu.memory_space<vmem>>, %arg2: memref<24x100xf32, #tpu.memory_space<vmem>>, %arg3: memref<24x100xf32, #tpu.memory_space<vmem>>, %arg4: memref<24x100xf32, #tpu.memory_space<vmem>>, %arg5: memref<24x1xf32, #tpu.memory_space<vmem>>) attributes {dimension_semantics = [#tpu.dimension_semantics<parallel>], iteration_bounds = array<i64: 2>, scalar_prefetch = 0 : i64, scratch_operands = 0 : i64, tpu.core_type = #tpu.core_type<tc>, window_params = [{transform_indices = @transform_0, window_bounds = array<i64: 24, 100>}, {transform_indices = @transform_1, window_bounds = array<i64: 24, 100>}, {transform_indices = @transform_2, window_bounds = array<i64: 24, 100>}, {transform_indices = @transform_3, window_bounds = array<i64: 24, 100>}, {transform_indices = @transform_4, window_bounds = array<i64: 24, 1>}]} {
    %c0 = arith.constant 0 : index
    %c0_0 = arith.constant 0 : index
    %0 = vector.load %arg1[%c0, %c0_0] : memref<24x100xf32, #tpu.memory_space<vmem>>, vector<24x100xf32>
    %c0_1 = arith.constant 0 : index
    %c0_2 = arith.constant 0 : index
    %1 = vector.load %arg2[%c0_1, %c0_2] : memref<24x100xf32, #tpu.memory_space<vmem>>, vector<24x100xf32>
    %c0_3 = arith.constant 0 : index
    %c0_4 = arith.constant 0 : index
    %2 = vector.load %arg3[%c0_3, %c0_4] : memref<24x100xf32, #tpu.memory_space<vmem>>, vector<24x100xf32>
    %c0_5 = arith.constant 0 : index
    %c0_6 = arith.constant 0 : index
    %3 = vector.load %arg4[%c0_5, %c0_6] : memref<24x100xf32, #tpu.memory_space<vmem>>, vector<24x100xf32>
    %4 = arith.subf %0, %2 : vector<24x100xf32>
    %5 = arith.subf %0, %1 : vector<24x100xf32>
    %6 = arith.subf %1, %3 : vector<24x100xf32>
    %7 = arith.mulf %4, %4 : vector<24x100xf32>
    %8 = arith.mulf %5, %5 : vector<24x100xf32>
    %9 = arith.subf %7, %8 : vector<24x100xf32>
    %cst = arith.constant dense<0.000000e+00> : vector<24xf32>
    %10 = vector.multi_reduction <add>, %9, %cst [1] : vector<24x100xf32> to vector<24xf32>
    %11 = vector.shape_cast %10 : vector<24xf32> to vector<24x1xf32>
    %12 = arith.mulf %6, %6 : vector<24x100xf32>
    %13 = arith.subf %7, %12 : vector<24x100xf32>
    %cst_7 = arith.constant dense<0.000000e+00> : vector<24xf32>
    %14 = vector.multi_reduction <add>, %13, %cst_7 [1] : vector<24x100xf32> to vector<24xf32>
    %15 = vector.shape_cast %14 : vector<24xf32> to vector<24x1xf32>
    %cst_8 = arith.constant 2.000000e+00 : f32
    %16 = vector.broadcast %cst_8 : f32 to vector<24x1xf32>
    %17 = arith.addf %16, %11 : vector<24x1xf32>
    %cst_9 = arith.constant 0.000000e+00 : f32
    %18 = vector.broadcast %cst_9 : f32 to vector<24x1xf32>
    %19 = arith.maximumf %17, %18 : vector<24x1xf32>
    %cst_10 = arith.constant 1.000000e+00 : f32
    %20 = vector.broadcast %cst_10 : f32 to vector<24x1xf32>
    %21 = arith.addf %20, %15 : vector<24x1xf32>
    %cst_11 = arith.constant 0.000000e+00 : f32
    %22 = vector.broadcast %cst_11 : f32 to vector<24x1xf32>
    %23 = arith.maximumf %21, %22 : vector<24x1xf32>
    %24 = arith.addf %19, %23 : vector<24x1xf32>
    %c0_12 = arith.constant 0 : index
    %c0_13 = arith.constant 0 : index
    %25 = vector.load %arg5[%c0_12, %c0_13] : memref<24x1xf32, #tpu.memory_space<vmem>>, vector<24x1xf32>
    tpu.vector_store %arg5[%c0_12, %c0_13], %24 {strides = array<i32>} : memref<24x1xf32, #tpu.memory_space<vmem>>, vector<24x1xf32>,
    return
  }
  func.func @transform_0(%arg0: i32) -> (i32, i32) {
    %c0_i32 = arith.constant 0 : i32
    %c0_i32_0 = arith.constant 0 : i32
    return %arg0, %c0_i32 : i32, i32
  }
  func.func @transform_1(%arg0: i32) -> (i32, i32) {
    %c0_i32 = arith.constant 0 : i32
    %c0_i32_0 = arith.constant 0 : i32
    return %arg0, %c0_i32 : i32, i32
  }
  func.func @transform_2(%arg0: i32) -> (i32, i32) {
    %c0_i32 = arith.constant 0 : i32
    %c0_i32_0 = arith.constant 0 : i32
    return %arg0, %c0_i32 : i32, i32
  }
  func.func @transform_3(%arg0: i32) -> (i32, i32) {
    %c0_i32 = arith.constant 0 : i32
    %c0_i32_0 = arith.constant 0 : i32
    return %arg0, %c0_i32 : i32, i32
  }
  func.func @transform_4(%arg0: i32) -> (i32, i32) {
    %c0_i32 = arith.constant 0 : i32
    %c0_i32_0 = arith.constant 0 : i32
    return %arg0, %c0_i32 : i32, i32
  }
}

</mosaic_0001>

<llo_original>
// kernel: tpu_custom_call.1
$region0: #{tpu_custom_call.1}
  #allocation0 [shape = 'u32[]', space=smem, size = 0x4, offset = 0x4, fixed_abs, tag = 'smem constant byte address 0x4 - core index']
  #allocation1 [shape = 'u32[144,128]{1,0:T(1,128)}', space=vmem, size = 0x12000, scoped, tag = 'internal scratch']
  %s0 = inlined_call_operand.hbm [shape: f32[48,100], index: 0, kind: input, shape index: {}]
  %s1 = inlined_call_operand.hbm [shape: f32[48,100], index: 1, kind: input, shape index: {}]
  %s2 = inlined_call_operand.hbm [shape: f32[48,100], index: 2, kind: input, shape index: {}]
  %s3 = inlined_call_operand.hbm [shape: f32[48,100], index: 3, kind: input, shape index: {}]
  %s4 = inlined_call_operand.vmem [shape: f32[48,1], index: 4, kind: output, shape index: {}]
  %s5 = sld [smem:[#allocation0]]
  $region65: #{tpu_custom_call.1} parent=0
    _
  %s7 = ssub.s32 1, %s5
  %s8 = scalar_select 0, %s7, %s5
  $region1: #{tpu_custom_call.1} parent=0
    #allocation2 [shape = 'u8[24576]{0}', space=vmem, size = 0x6000, scoped, tag = 'input window, operand 0']
    #allocation3 [shape = 's32[2]{0}', space=sflag, size = 0x8, scoped, tag = 'scoped memory for tpu_custom_call.1']
    #allocation4 [shape = 'u8[24576]{0}', space=vmem, size = 0x6000, scoped, tag = 'input window, operand 1']
    #allocation5 [shape = 's32[2]{0}', space=sflag, size = 0x8, scoped, tag = 'scoped memory for tpu_custom_call.1']
    #allocation6 [shape = 'u8[24576]{0}', space=vmem, size = 0x6000, scoped, tag = 'input window, operand 2']
    #allocation7 [shape = 'u8[24576]{0}', space=vmem, size = 0x6000, scoped, tag = 'input window, operand 3']
    #allocation8 [shape = 's32[2]{0}', space=sflag, size = 0x8, scoped, tag = 'scoped memory for tpu_custom_call.1']
    %9 = vsyncpa [#allocation3], 0
    %s10 = scalar_lea.sflag [#allocation3], 1
    %11 = vsyncpa %s10, 0
    %12 = vsyncpa [#allocation5], 0
    %s13 = scalar_lea.sflag [#allocation5], 1
    %14 = vsyncpa %s13, 0
    %15 = vsyncpa [#allocation8], 0
    %s16 = scalar_lea.sflag [#allocation8], 1
    %17 = vsyncpa %s16, 0
    loop: start=0, step=1, limit=4
    $region2: #{tpu_custom_call.1} parent=1 // loop_pre_header
      _
    $region3: #{tpu_custom_call.1} parent=1 // loop_header
      %s19 = sphi 0, %s23
      %p20 = scmp.ge.s32.totalorder %s19, 4
      %s29 = sphi 0, %s31
      %s32 = sphi 0, %s29
      %s33 = sphi 0, %s32
      %s49 = sphi 0, %s33
      %s55 = sphi 0, %s57
      %s58 = sphi 0, %s55
      %s59 = sphi 0, %s58
      %s75 = sphi 0, %s59
      %s81 = sphi 0, %s83
      %s84 = sphi 0, %s81
      %s85 = sphi 0, %s84
      %s101 = sphi 0, %s85
      %s107 = sphi 0, %s109
      %s110 = sphi 0, %s107
      %s111 = sphi 0, %s110
      %s127 = sphi 0, %s111
      %s133 = sphi 0, %s135
      %s136 = sphi 0, %s133
      %s137 = sphi 0, %s136
      %s153 = sphi 0, %s137
    $region4: #{tpu_custom_call.1} parent=1 // loop_header_branch
      %22 = sbr.rel (%p20) target = $region8
    $region5: #{tpu_custom_call.1} parent=1 // loop_body
      %s24 = ssub.s32 %s19, 1
      %s25 = ssub.s32 %s19, 2
      %s26 = sadd.s32 %s19, 1
      %s27 = ssub.s32 %s19, %s26
      %p28 = scmp.eq.s32.totalorder %s27, 0
      %s30 = sadd.s32 %s29, 1
      %s31 = scalar_select %p28, %s29, %s30
      %p34 = pneg %p28
      %p35 = scmp.eq.s32.totalorder %s19, 1
      %p36 = por %p34, %p35
      %p37 = scmp.ne.s32.totalorder %s29, %s32
      %p38 = scmp.eq.s32.totalorder %s19, 0
      %p39 = por %p37, %p38
      %p40 = scmp.ne.s32.totalorder %s29, %s32
      %p41 = scmp.eq.s32.totalorder %s24, 1
      %p42 = por %p40, %p41
      %p43 = scmp.ne.s32.totalorder %s32, %s33
      %p44 = scmp.eq.s32.totalorder %s24, 0
      %p45 = por %p43, %p44
      %p46 = scmp.ne.s32.totalorder %s32, %s33
      %p47 = scmp.eq.s32.totalorder %s25, 1
      %p48 = por %p46, %p47
      %p50 = scmp.ne.s32.totalorder %s33, %s49
      %p51 = scmp.eq.s32.totalorder %s25, 0
      %p52 = por %p50, %p51
      %s53 = ssub.s32 %s19, %s26
      %p54 = scmp.eq.s32.totalorder %s53, 0
      %s56 = sadd.s32 %s55, 1
      %s57 = scalar_select %p54, %s55, %s56
      %p60 = pneg %p54
      %p61 = scmp.eq.s32.totalorder %s19, 1
      %p62 = por %p60, %p61
      %p63 = scmp.ne.s32.totalorder %s55, %s58
      %p64 = scmp.eq.s32.totalorder %s19, 0
      %p65 = por %p63, %p64
      %p66 = scmp.ne.s32.totalorder %s55, %s58
      %p67 = scmp.eq.s32.totalorder %s24, 1
      %p68 = por %p66, %p67
      %p69 = scmp.ne.s32.totalorder %s58, %s59
      %p70 = scmp.eq.s32.totalorder %s24, 0
      %p71 = por %p69, %p70
      %p72 = scmp.ne.s32.totalorder %s58, %s59
      %p73 = scmp.eq.s32.totalorder %s25, 1
      %p74 = por %p72, %p73
      %p76 = scmp.ne.s32.totalorder %s59, %s75
      %p77 = scmp.eq.s32.totalorder %s25, 0
      %p78 = por %p76, %p77
      %s79 = ssub.s32 %s19, %s26
      %p80 = scmp.eq.s32.totalorder %s79, 0
      %s82 = sadd.s32 %s81, 1
      %s83 = scalar_select %p80, %s81, %s82
      %p86 = pneg %p80
      %p87 = scmp.eq.s32.totalorder %s19, 1
      %p88 = por %p86, %p87
      %p89 = scmp.ne.s32.totalorder %s81, %s84
      %p90 = scmp.eq.s32.totalorder %s19, 0
      %p91 = por %p89, %p90
      %p92 = scmp.ne.s32.totalorder %s81, %s84
      %p93 = scmp.eq.s32.totalorder %s24, 1
      %p94 = por %p92, %p93
      %p95 = scmp.ne.s32.totalorder %s84, %s85
      %p96 = scmp.eq.s32.totalorder %s24, 0
      %p97 = por %p95, %p96
      %p98 = scmp.ne.s32.totalorder %s84, %s85
      %p99 = scmp.eq.s32.totalorder %s25, 1
      %p100 = por %p98, %p99
      %p102 = scmp.ne.s32.totalorder %s85, %s101
      %p103 = scmp.eq.s32.totalorder %s25, 0
      %p104 = por %p102, %p103
      %s105 = ssub.s32 %s19, %s26
      %p106 = scmp.eq.s32.totalorder %s105, 0
      %s108 = sadd.s32 %s107, 1
      %s109 = scalar_select %p106, %s107, %s108
      %p112 = pneg %p106
      %p113 = scmp.eq.s32.totalorder %s19, 1
      %p114 = por %p112, %p113
      %p115 = scmp.ne.s32.totalorder %s107, %s110
      %p116 = scmp.eq.s32.totalorder %s19, 0
      %p117 = por %p115, %p116
      %p118 = scmp.ne.s32.totalorder %s107, %s110
      %p119 = scmp.eq.s32.totalorder %s24, 1
      %p120 = por %p118, %p119
      %p121 = scmp.ne.s32.totalorder %s110, %s111
      %p122 = scmp.eq.s32.totalorder %s24, 0
      %p123 = por %p121, %p122
      %p124 = scmp.ne.s32.totalorder %s110, %s111
      %p125 = scmp.eq.s32.totalorder %s25, 1
      %p126 = por %p124, %p125
      %p128 = scmp.ne.s32.totalorder %s111, %s127
      %p129 = scmp.eq.s32.totalorder %s25, 0
      %p130 = por %p128, %p129
      %s131 = ssub.s32 %s19, %s26
      %p132 = scmp.eq.s32.totalorder %s131, 0
      %s134 = sadd.s32 %s133, 1
      %s135 = scalar_select %p132, %s133, %s134
      %p138 = pneg %p132
      %p139 = scmp.eq.s32.totalorder %s19, 1
      %p140 = por %p138, %p139
      %p141 = scmp.ne.s32.totalorder %s133, %s136
      %p142 = scmp.eq.s32.totalorder %s19, 0
      %p143 = por %p141, %p142
      %p144 = scmp.ne.s32.totalorder %s133, %s136
      %p145 = scmp.eq.s32.totalorder %s24, 1
      %p146 = por %p144, %p145
      %p147 = scmp.ne.s32.totalorder %s136, %s137
      %p148 = scmp.eq.s32.totalorder %s24, 0
      %p149 = por %p147, %p148
      %p150 = scmp.ne.s32.totalorder %s136, %s137
      %p151 = scmp.eq.s32.totalorder %s25, 1
      %p152 = por %p150, %p151
      %p154 = scmp.ne.s32.totalorder %s137, %s153
      %p155 = scmp.eq.s32.totalorder %s25, 0
      %p156 = por %p154, %p155
      %p157 = scmp.le.s32.totalorder 1, %s19
      %p158 = scmp.lt.s32.totalorder %s19, 3
      %p159 = pnand %p157, %p158
      %p160 = pneg %p159
      // Predicated region
      $region9: #{tpu_custom_call.1} parent=5 // pred_check
        _
      $region10: #{tpu_custom_call.1} parent=5 // pred_check_branch
        %162 = sbr.rel (%p159) target = $region12
      $region11: #{tpu_custom_call.1} parent=5 // pred_region
        %s163 = ssub.s32 %s19, 1
      $region12: #{tpu_custom_call.1} parent=5 // pred_fallthru
        _
      %p164 = scmp.lt.s32.totalorder %s19, 2
      // Predicated region
      $region13: #{tpu_custom_call.1} parent=5 // pred_check
        %p165 = pneg %p164
      $region14: #{tpu_custom_call.1} parent=5 // pred_check_branch
        %167 = sbr.rel (%p165) target = $region16
      $region15: #{tpu_custom_call.1} parent=5 // pred_region
        // Predicated region
        $region17: #{tpu_custom_call.1} parent=15 // pred_check
          %p168 = pneg %p39
        $region18: #{tpu_custom_call.1} parent=15 // pred_check_branch
          %170 = sbr.rel (%p168) target = $region20
        $region19: #{tpu_custom_call.1} parent=15 // pred_region
          %s171 = sand.u32 %s29, 1
          %s172 = scalar_lea.sflag [#allocation3], %s171
          %s173 = sand.u32 %s29, 1
          %s174 = smul.addr %s173, 24
          %s175 = scalar_lea.vmem [#allocation2], %s174
          %s176 = smul.u32 3, %s19
          %s178 = ssub.s32 384, 384
          %179 = vsyncadd %s172, %s178
          %s180 = smul.addr %s176, 128
          %s181 = scalar_lea.hbm %s0, %s180
          %s182 = sshll.u32 %s175, 4
          %s183 = int_to_ptr.vmem [resolvable:$true] %s182
          %188 = dma.hbm_to_vmem [thread:$0]  %s181, 384, %s183, %s172, 128, 128, 8
        $region20: #{tpu_custom_call.1} parent=15 // pred_fallthru
          _
        // Predicated region
        $region21: #{tpu_custom_call.1} parent=15 // pred_check
          %p189 = pneg %p65
        $region22: #{tpu_custom_call.1} parent=15 // pred_check_branch
          %191 = sbr.rel (%p189) target = $region24
        $region23: #{tpu_custom_call.1} parent=15 // pred_region
          %s192 = sand.u32 %s19, 1
          %s193 = scalar_lea.sflag [#allocation5], %s192
          %s194 = sand.u32 %s55, 1
          %s195 = smul.addr %s194, 24
          %s196 = scalar_lea.vmem [#allocation4], %s195
          %s197 = smul.u32 3, %s19
          %s199 = ssub.s32 384, 384
          %200 = vsyncadd %s193, %s199
          %s201 = smul.addr %s197, 128
          %s202 = scalar_lea.hbm %s1, %s201
          %s203 = sshll.u32 %s196, 4
          %s204 = int_to_ptr.vmem [resolvable:$true] %s203
          %209 = dma.hbm_to_vmem [thread:$0]  %s202, 384, %s204, %s193, 128, 128, 8
        $region24: #{tpu_custom_call.1} parent=15 // pred_fallthru
          _
        // Predicated region
        $region25: #{tpu_custom_call.1} parent=15 // pred_check
          %p210 = pneg %p91
        $region26: #{tpu_custom_call.1} parent=15 // pred_check_branch
          %212 = sbr.rel (%p210) target = $region28
        $region27: #{tpu_custom_call.1} parent=15 // pred_region
          %s213 = sand.u32 %s19, 1
          %s214 = scalar_lea.sflag [#allocation5], %s213
          %s215 = sand.u32 %s81, 1
          %s216 = smul.addr %s215, 24
          %s217 = scalar_lea.vmem [#allocation6], %s216
          %s218 = smul.u32 3, %s19
          %s220 = ssub.s32 384, 384
          %221 = vsyncadd %s214, %s220
          %s222 = smul.addr %s218, 128
          %s223 = scalar_lea.hbm %s2, %s222
          %s224 = sshll.u32 %s217, 4
          %s225 = int_to_ptr.vmem [resolvable:$true] %s224
          %230 = dma.hbm_to_vmem [thread:$0]  %s223, 384, %s225, %s214, 128, 128, 8
        $region28: #{tpu_custom_call.1} parent=15 // pred_fallthru
          _
        // Predicated region
        $region29: #{tpu_custom_call.1} parent=15 // pred_check
          %p231 = pneg %p117
        $region30: #{tpu_custom_call.1} parent=15 // pred_check_branch
          %233 = sbr.rel (%p231) target = $region32
        $region31: #{tpu_custom_call.1} parent=15 // pred_region
          %s234 = sand.u32 %s107, 1
          %s235 = scalar_lea.sflag [#allocation8], %s234
          %s236 = sand.u32 %s107, 1
          %s237 = smul.addr %s236, 24
          %s238 = scalar_lea.vmem [#allocation7], %s237
          %s239 = smul.u32 3, %s19
          %s241 = ssub.s32 384, 384
          %242 = vsyncadd %s235, %s241
          %s243 = smul.addr %s239, 128
          %s244 = scalar_lea.hbm %s3, %s243
          %s245 = sshll.u32 %s238, 4
          %s246 = int_to_ptr.vmem [resolvable:$true] %s245
          %251 = dma.hbm_to_vmem [thread:$0]  %s244, 384, %s246, %s235, 128, 128, 8
        $region32: #{tpu_custom_call.1} parent=15 // pred_fallthru
          _
      $region16: #{tpu_custom_call.1} parent=5 // pred_fallthru
        _
      %p252 = scmp.le.s32.totalorder 1, %s19
      %p253 = scmp.lt.s32.totalorder %s19, 3
      %p254 = pnand %p252, %p253
      %p255 = pneg %p254
      // Predicated region
      $region33: #{tpu_custom_call.1} parent=5 // pred_check
        _
      $region34: #{tpu_custom_call.1} parent=5 // pred_check_branch
        %257 = sbr.rel (%p254) target = $region36
      $region35: #{tpu_custom_call.1} parent=5 // pred_region
        %s258 = ssub.s32 %s19, 1
        %s259 = sand.u32 %s32, 1
        %s260 = scalar_lea.sflag [#allocation3], %s259
        %s261 = sand.u32 %s32, 1
        %s262 = smul.addr %s261, 24
        %s263 = scalar_lea.vmem [#allocation2], %s262
        // Predicated region
        $region37: #{tpu_custom_call.1} parent=35 // pred_check
          %p264 = pneg %p45
        $region38: #{tpu_custom_call.1} parent=35 // pred_check_branch
          %266 = sbr.rel (%p264) target = $region40
        $region39: #{tpu_custom_call.1} parent=35 // pred_region
          %267 = dma.done %s260, 384
        $region40: #{tpu_custom_call.1} parent=35 // pred_fallthru
          _
        %s268 = sand.u32 %s24, 1
        %s269 = scalar_lea.sflag [#allocation5], %s268
        %s270 = sand.u32 %s58, 1
        %s271 = smul.addr %s270, 24
        %s272 = scalar_lea.vmem [#allocation4], %s271
        // Predicated region
        $region41: #{tpu_custom_call.1} parent=35 // pred_check
          %p273 = pneg %p71
        $region42: #{tpu_custom_call.1} parent=35 // pred_check_branch
          %275 = sbr.rel (%p273) target = $region44
        $region43: #{tpu_custom_call.1} parent=35 // pred_region
          %276 = dma.done %s269, 384
        $region44: #{tpu_custom_call.1} parent=35 // pred_fallthru
          _
        %s277 = sand.u32 %s24, 1
        %s278 = scalar_lea.sflag [#allocation5], %s277
        %s279 = sand.u32 %s84, 1
        %s280 = smul.addr %s279, 24
        %s281 = scalar_lea.vmem [#allocation6], %s280
        // Predicated region
        $region45: #{tpu_custom_call.1} parent=35 // pred_check
          %p282 = pneg %p97
        $region46: #{tpu_custom_call.1} parent=35 // pred_check_branch
          %284 = sbr.rel (%p282) target = $region48
        $region47: #{tpu_custom_call.1} parent=35 // pred_region
          %285 = dma.done %s278, 384
        $region48: #{tpu_custom_call.1} parent=35 // pred_fallthru
          _
        %s286 = sand.u32 %s110, 1
        %s287 = scalar_lea.sflag [#allocation8], %s286
        %s288 = sand.u32 %s110, 1
        %s289 = smul.addr %s288, 24
        %s290 = scalar_lea.vmem [#allocation7], %s289
        // Predicated region
        $region49: #{tpu_custom_call.1} parent=35 // pred_check
          %p291 = pneg %p123
        $region50: #{tpu_custom_call.1} parent=35 // pred_check_branch
          %293 = sbr.rel (%p291) target = $region52
        $region51: #{tpu_custom_call.1} parent=35 // pred_region
          %294 = dma.done %s287, 384
        $region52: #{tpu_custom_call.1} parent=35 // pred_fallthru
          _
        %s295 = sand.u32 %s32, 1
        %s296 = scalar_lea.sflag [#allocation3], %s295
        %s297 = sand.u32 %s32, 1
        %s298 = smul.addr %s297, 24
        %s299 = scalar_lea.vmem [#allocation2], %s298
        %p300 = pneg %p45
        %p301 = pneg %p42
        %s302 = sand.u32 %s24, 1
        %s303 = scalar_lea.sflag [#allocation5], %s302
        %s304 = sand.u32 %s58, 1
        %s305 = smul.addr %s304, 24
        %s306 = scalar_lea.vmem [#allocation4], %s305
        %p307 = pneg %p71
        %p308 = pneg %p68
        %s309 = sand.u32 %s24, 1
        %s310 = scalar_lea.sflag [#allocation5], %s309
        %s311 = sand.u32 %s84, 1
        %s312 = smul.addr %s311, 24
        %s313 = scalar_lea.vmem [#allocation6], %s312
        %p314 = pneg %p97
        %p315 = pneg %p94
        %s316 = sand.u32 %s110, 1
        %s317 = scalar_lea.sflag [#allocation8], %s316
        %s318 = sand.u32 %s110, 1
        %s319 = smul.addr %s318, 24
        %s320 = scalar_lea.vmem [#allocation7], %s319
        %p321 = pneg %p123
        %p322 = pneg %p120
        %p323 = pneg %p149
        %p324 = pneg %p146
        %s325 = smul.u32 3, %s24
        %p326 = scmp.lt.s32.totalorder %s325, 5
        %s327 = scalar_select %p326, %s325, 5
        %s328 = smul.addr %s327, 8
        %s329 = scalar_lea.vmem %s4, %s328
        %s330 = smul.u32 3, %s24
        %s331 = smul.u32 3, %s24
        %s332 = smul.u32 3, %s24
        %s333 = smul.u32 3, %s24
        %s334 = smul.u32 3, %s24
        %p335 = scmp.lt.s32.totalorder %s334, 5
        %s336 = scalar_select %p335, %s334, 5
        %s337 = smul.addr %s336, 8
        %s338 = scalar_lea.vmem %s4, %s337
        %s339 = smul.u32 3, %s24
        %v340 = vld [vmem:[%s263] sm:$0xff]
        %v341 = vld [vmem:[%s263 + $0x8] sm:$0xff]
        %v342 = vld [vmem:[%s263 + $0x10] sm:$0xff]
        %v343 = vld [vmem:[%s272] sm:$0xff]
        %v344 = vld [vmem:[%s272 + $0x8] sm:$0xff]
        %v345 = vld [vmem:[%s272 + $0x10] sm:$0xff]
        %v346 = vld [vmem:[%s281] sm:$0xff]
        %v347 = vld [vmem:[%s281 + $0x8] sm:$0xff]
        %v348 = vld [vmem:[%s281 + $0x10] sm:$0xff]
        %v349 = vld [vmem:[%s290] sm:$0xff]
        %v350 = vld [vmem:[%s290 + $0x8] sm:$0xff]
        %v351 = vld [vmem:[%s290 + $0x10] sm:$0xff]
        %v352 = vsub.f32 %v340, %v346
        %v353 = vsub.f32 %v341, %v347
        %v354 = vsub.f32 %v342, %v348
        %v355 = vsub.f32 %v340, %v343
        %v356 = vsub.f32 %v341, %v344
        %v357 = vsub.f32 %v342, %v345
        %v358 = vsub.f32 %v343, %v349
        %v359 = vsub.f32 %v344, %v350
        %v360 = vsub.f32 %v345, %v351
        %v361 = vmul.f32 %v352, %v352
        %v362 = vmul.f32 %v353, %v353
        %v363 = vmul.f32 %v354, %v354
        %v364 = vmul.f32 %v355, %v355
        %v365 = vmul.f32 %v356, %v356
        %v366 = vmul.f32 %v357, %v357
        %v367 = vsub.f32 %v361, %v364
        %v368 = vsub.f32 %v362, %v365
        %v369 = vsub.f32 %v363, %v366
        %vm370 = vcmask 818176
        %v371 = vsel %vm370, %v367, 0.0
        %372 = vadd.xlane.f32.xlu0 %v371
        %v373 = vpop.xlane.xlu0 %372
        %v374 = vsel %vm370, %v368, 0.0
        %375 = vadd.xlane.f32.xlu0 %v374
        %v376 = vpop.xlane.xlu0 %375
        %v377 = vsel %vm370, %v369, 0.0
        %378 = vadd.xlane.f32.xlu0 %v377
        %v379 = vpop.xlane.xlu0 %378
        %v380 = vmul.f32 %v358, %v358
        %v381 = vmul.f32 %v359, %v359
        %v382 = vmul.f32 %v360, %v360
        %v383 = vsub.f32 %v361, %v380
        %v384 = vsub.f32 %v362, %v381
        %v385 = vsub.f32 %v363, %v382
        %v386 = vsel %vm370, %v383, 0.0
        %387 = vadd.xlane.f32.xlu0 %v386
        %v388 = vpop.xlane.xlu0 %387
        %v389 = vsel %vm370, %v384, 0.0
        %390 = vadd.xlane.f32.xlu0 %v389
        %v391 = vpop.xlane.xlu0 %390
        %v392 = vsel %vm370, %v385, 0.0
        %393 = vadd.xlane.f32.xlu0 %v392
        %v394 = vpop.xlane.xlu0 %393
        %v395 = vadd.f32 %v373, 2.0
        %v396 = vadd.f32 %v376, 2.0
        %v397 = vadd.f32 %v379, 2.0
        %v398 = vmax.f32 %v395, 0.0
        %v399 = vmax.f32 %v396, 0.0
        %v400 = vmax.f32 %v397, 0.0
        %v401 = vadd.f32 %v388, 1.0
        %v402 = vadd.f32 %v391, 1.0
        %v403 = vadd.f32 %v394, 1.0
        %v404 = vmax.f32 %v401, 0.0
        %v405 = vmax.f32 %v402, 0.0
        %v406 = vmax.f32 %v403, 0.0
        %v407 = vadd.f32 %v398, %v404
        %v408 = vadd.f32 %v399, %v405
        %v409 = vadd.f32 %v400, %v406
        %vm410 = vcmask 7168
        %411 = vst.msk [vmem:[%s338] sm:$0xff] %vm410, %v407
        %412 = vst.msk [vmem:[%s338 + $0x8] sm:$0xff] %vm410, %v408
        %413 = vst.msk [vmem:[%s338 + $0x10] sm:$0xff] %vm410, %v409
        %s414 = smul.u32 3, %s24
        %p415 = scmp.lt.s32.totalorder %s414, 5
        %s416 = scalar_select %p415, %s414, 5
        %s417 = smul.addr %s416, 8
        %s418 = scalar_lea.vmem %s4, %s417
        // Predicated region
        $region53: #{tpu_custom_call.1} parent=35 // pred_check
          %p419 = pneg %p146
        $region54: #{tpu_custom_call.1} parent=35 // pred_check_branch
          %421 = sbr.rel (%p419) target = $region56
        $region55: #{tpu_custom_call.1} parent=35 // pred_region
          %s422 = smul.u32 3, %s24
        $region56: #{tpu_custom_call.1} parent=35 // pred_fallthru
          _
      $region36: #{tpu_custom_call.1} parent=5 // pred_fallthru
        _
      %p423 = scmp.le.s32.totalorder 2, %s19
      // Predicated region
      $region57: #{tpu_custom_call.1} parent=5 // pred_check
        %p424 = pneg %p423
      $region58: #{tpu_custom_call.1} parent=5 // pred_check_branch
        %426 = sbr.rel (%p424) target = $region60
      $region59: #{tpu_custom_call.1} parent=5 // pred_region
        %s427 = ssub.s32 %s19, 2
        // Predicated region
        $region61: #{tpu_custom_call.1} parent=59 // pred_check
          %p428 = pneg %p152
        $region62: #{tpu_custom_call.1} parent=59 // pred_check_branch
          %430 = sbr.rel (%p428) target = $region64
        $region63: #{tpu_custom_call.1} parent=59 // pred_region
          %s431 = smul.u32 3, %s25
          %p432 = scmp.lt.s32.totalorder %s431, 5
          %s433 = scalar_select %p432, %s431, 5
          %s434 = smul.addr %s433, 8
          %s435 = scalar_lea.vmem %s4, %s434
        $region64: #{tpu_custom_call.1} parent=59 // pred_fallthru
          _
      $region60: #{tpu_custom_call.1} parent=5 // pred_fallthru
        _
    $region6: #{tpu_custom_call.1} parent=1 // loop_footer
      %s23 = sadd.s32 1, %s19
    $region7: #{tpu_custom_call.1} parent=1 // loop_footer_branch
      %18 = sbr.rel target = $region3
    $region8: #{tpu_custom_call.1} parent=1 // loop_exit
      _
    %436 = vsyncpa [#allocation3], 1
    %s437 = scalar_lea.sflag [#allocation3], 1
    %438 = vsyncpa %s437, 1
    %439 = vsyncpa [#allocation5], 1
    %s440 = scalar_lea.sflag [#allocation5], 1
    %441 = vsyncpa %s440, 1
    %442 = vsyncpa [#allocation8], 1
    %s443 = scalar_lea.sflag [#allocation8], 1
    %444 = vsyncpa %s443, 1

</llo_original>
